<compile_context>
chip_gen: v6e
topology: v6e:2x2x1
jax: 0.10.0
libtpu: 0.0.40
codegen_flags: <defaults>
</compile_context>

<pallas_src>
from typing import NamedTuple

import jax
import jax.numpy as jnp
from jax.experimental import pallas as pl
from jax.experimental.pallas import tpu as pltpu

STATE_DIMS = 8
N_ACTIONS = 4
HIDDEN = 128

NUM_TENSORCORES = 2   # 2 on v7x; the extra grid step is ~free on v5e/v6e.
MAX_BATCH_TILE = 1024  # rows per grid step cap (VMEM headroom at 256-wide f32 out)


def _round_up(n, m):
    return ((n + m - 1) // m) * m


def _cdiv(a, b):
    return -(-a // b)


class DQNParams(NamedTuple):
    """Packed parameters for one net (N=128) or a fused online+target pair (N=256)."""
    w1: jax.Array   # (8, N)      compute dtype (bf16 default)
    w23: jax.Array  # (2, N, N)   compute dtype; [0]=layer2, [1]=layer3 (out-padded)
    b: jax.Array    # (8, N)      f32; rows 0,1,2 = b1, b2, b3 (rest zero)


# -----------------------------------------------------------------------------
# Kernel body (shared by single-net and fused-pair forwards)
# -----------------------------------------------------------------------------
def dqn_mlp_kernel(x_ref, w1_ref, w23_ref, b_ref, o_ref):
    """3-layer MLP. Matmuls on the MXU (f32 accumulate); bias + ReLU in f32 on
    the VPU (avoids bf16 VPU ops, which v5e lacks)."""
    cdt = w1_ref.dtype
    x = x_ref[...].astype(cdt)                                   # (tb, 8)
    b = b_ref[...]                                               # (8, N) f32

    h = jnp.dot(x, w1_ref[...], preferred_element_type=jnp.float32)
    h = jnp.maximum(h + b[0:1, :], 0.0)
    h = jnp.dot(h.astype(cdt), w23_ref[0], preferred_element_type=jnp.float32)
    h = jnp.maximum(h + b[1:2, :], 0.0)
    out = jnp.dot(h.astype(cdt), w23_ref[1], preferred_element_type=jnp.float32)
    o_ref[...] = (out + b[2:3, :]).astype(o_ref.dtype)


# -----------------------------------------------------------------------------
# Parameter handling (one-time, outside the hot loop)
# -----------------------------------------------------------------------------
def init_params(key):
    """PyTorch-Linear-style init U(-1/sqrt(fan_in), 1/sqrt(fan_in)); weights
    already transposed to (in_features, out_features)."""
    def linear(k, fan_in, fan_out):
        kw, kb = jax.random.split(k)
        bound = 1.0 / jnp.sqrt(fan_in)
        w = jax.random.uniform(kw, (fan_in, fan_out), jnp.float32, -bound, bound)
        b = jax.random.uniform(kb, (1, fan_out), jnp.float32, -bound, bound)
        return w, b

    k1, k2, k3 = jax.random.split(key, 3)
    w1, b1 = linear(k1, STATE_DIMS, HIDDEN)
    w2, b2 = linear(k2, HIDDEN, HIDDEN)
    w3, b3 = linear(k3, HIDDEN, N_ACTIONS)
    return (w1, b1, w2, b2, w3, b3)


def prepare_params(params, dtype=jnp.bfloat16):
    """Pack one net: w1 (8,128), w23 (2,128,128) (layer3 out-padded 4->128),
    biases in an f32 (8,128) block. dtype=bf16 works on every TPU generation's
    MXU; use f32 only if exactness matters."""
    w1, b1, w2, b2, w3, b3 = params
    w3p = jnp.zeros((HIDDEN, HIDDEN), jnp.float32).at[:, :N_ACTIONS].set(w3)
    b3p = jnp.zeros((1, HIDDEN), jnp.float32).at[:, :N_ACTIONS].set(b3)
    w23 = jnp.stack([w2, w3p]).astype(dtype)
    biases = (jnp.zeros((8, HIDDEN), jnp.float32)
              .at[0].set(b1[0]).at[1].set(b2[0]).at[2].set(b3p[0]))
    return DQNParams(w1=w1.astype(dtype), w23=w23, b=biases)


def prepare_pair_params(online, target, dtype=jnp.bfloat16):
    """Block-diagonally pack online+target nets into one 256-wide parameter set:
    layer1 -> [W1_on | W1_tg] (8,256); layers 2/3 -> diag(W_on, W_tg) (256,256).
    One 3-matmul pass then evaluates both nets (fills the 256x256 MXU)."""
    ow1, ob1, ow2, ob2, ow3, ob3 = online
    tw1, tb1, tw2, tb2, tw3, tb3 = target
    H, H2 = HIDDEN, 2 * HIDDEN

    def blockdiag(a, b):
        m = jnp.zeros((H2, H2), jnp.float32)
        return m.at[:H, :H].set(a).at[H:, H:].set(b)

    ow3p = jnp.zeros((H, H), jnp.float32).at[:, :N_ACTIONS].set(ow3)
    tw3p = jnp.zeros((H, H), jnp.float32).at[:, :N_ACTIONS].set(tw3)

    w1p = jnp.concatenate([ow1, tw1], axis=1).astype(dtype)          # (8, 256)
    w23 = jnp.stack([blockdiag(ow2, tw2),
                     blockdiag(ow3p, tw3p)]).astype(dtype)           # (2, 256, 256)
    b = jnp.zeros((8, H2), jnp.float32)
    b = b.at[0, :H].set(ob1[0]).at[0, H:].set(tb1[0])
    b = b.at[1, :H].set(ob2[0]).at[1, H:].set(tb2[0])
    b = b.at[2, :N_ACTIONS].set(ob3[0]).at[2, H:H + N_ACTIONS].set(tb3[0])
    return DQNParams(w1=w1p, w23=w23, b=b)


# -----------------------------------------------------------------------------
# Wrappers
# -----------------------------------------------------------------------------
def _xla_mlp(x, p):
    """Plain-XLA path for tiny acting batches (same math as the kernel)."""
    cdt = p.w1.dtype
    h = jnp.dot(x.astype(cdt), p.w1, preferred_element_type=jnp.float32)
    h = jnp.maximum(h + p.b[0:1, :], 0.0)
    h = jnp.dot(h.astype(cdt), p.w23[0], preferred_element_type=jnp.float32)
    h = jnp.maximum(h + p.b[1:2, :], 0.0)
    out = jnp.dot(h.astype(cdt), p.w23[1], preferred_element_type=jnp.float32)
    return out + p.b[2:3, :]


def _run_mlp(x, p, *, num_cores=NUM_TENSORCORES, max_tile=MAX_BATCH_TILE,
             min_pallas_batch=16):
    """Run the packed MLP; returns the (B, N) padded-width output."""
    B = x.shape[0]
    N = p.w1.shape[1]
    x = x.astype(jnp.float32)

    if B < min_pallas_batch:
        return _xla_mlp(x, p)

    # One tile per TensorCore for typical replay batches; tiles rounded to 8
    # rows, capped for VMEM; batch padding is at most a few rows.
    g = max(num_cores, _cdiv(B, max_tile))
    g = _round_up(g, num_cores)
    tb = _round_up(_cdiv(B, g), 8)
    Bp = tb * g
    xp = x if Bp == B else jnp.zeros((Bp, STATE_DIMS), jnp.float32).at[:B].set(x)

    flops = 2 * Bp * (STATE_DIMS * N + 2 * N * N)
    bytes_accessed = (xp.size * 4
                      + p.w1.size * p.w1.dtype.itemsize
                      + p.w23.size * p.w23.dtype.itemsize
                      + p.b.size * 4
                      + Bp * N * 4)

    out = pl.pallas_call(
        dqn_mlp_kernel,
        out_shape=jax.ShapeDtypeStruct((Bp, N), jnp.float32),
        grid=(g,),
        in_specs=[
            pl.BlockSpec((tb, STATE_DIMS), lambda i: (i, 0)),   # x rows, full 8 lanes
            pl.BlockSpec((STATE_DIMS, N), lambda i: (0, 0)),    # w1 (resident)
            pl.BlockSpec((2, N, N), lambda i: (0, 0, 0)),       # w2/w3 (resident)
            pl.BlockSpec((8, N), lambda i: (0, 0)),             # biases f32 (resident)
        ],
        out_specs=pl.BlockSpec((tb, N), lambda i: (i, 0)),
        compiler_params=pltpu.CompilerParams(
            dimension_semantics=("parallel",)),
        cost_estimate=pl.CostEstimate(
            flops=int(flops), transcendentals=0,
            bytes_accessed=int(bytes_accessed)),
    )(xp, p.w1, p.w23, p.b)
    return out[:B]


def dqn_forward(x, packed_params, **kw):
    """Q(x) for a single net, shape (B, N_ACTIONS)."""
    out = _run_mlp(x, packed_params, **kw)
    return out[:, :N_ACTIONS]


def dqn_pair_forward(x, pair_packed_params, **kw):
    """Fused online+target forward on the same input (one pallas_call, 256-wide
    block-diagonal weights). Returns (Q_online, Q_target), each (B, N_ACTIONS).
    NOTE: padded action lanes are exactly 0; any future in-kernel max/argmax
    over the action dim must mask lanes >= N_ACTIONS."""
    out = _run_mlp(x, pair_packed_params, **kw)
    return out[:, :N_ACTIONS], out[:, HIDDEN:HIDDEN + N_ACTIONS]


def dqn_reference(x, params):
    """Plain-JAX reference matching the PyTorch forward."""
    w1, b1, w2, b2, w3, b3 = params
    h1 = jnp.maximum(x @ w1 + b1, 0.0)
    h2 = jnp.maximum(h1 @ w2 + b2, 0.0)
    return h2 @ w3 + b3


if __name__ == "__main__":
    key = jax.random.PRNGKey(0)
    k_online, k_target, k_x1, k_x2 = jax.random.split(key, 4)

    online_params = init_params(k_online)
    target_params = init_params(k_target)

    # --- f32 Pallas path, tiny batch forced through the kernel ---------------
    x8 = jax.random.normal(k_x1, (8, STATE_DIMS), jnp.float32)
    ref8 = dqn_reference(x8, online_params)
    online_f32 = prepare_params(online_params, jnp.float32)
    out8 = jax.block_until_ready(dqn_forward(x8, online_f32, min_pallas_batch=0))
    assert out8.shape == (8, N_ACTIONS)
    assert jnp.allclose(out8, ref8, atol=1e-5, rtol=1e-5), "f32 kernel mismatch"

    # --- bf16 default path, replay-sized non-multiple-of-8 batch -------------
    xb = jax.random.normal(k_x2, (300, STATE_DIMS), jnp.float32)
    refb = dqn_reference(xb, online_params)
    online_bf16 = prepare_params(online_params)            # bf16 default
    outb = jax.block_until_ready(dqn_forward(xb, online_bf16))
    assert outb.shape == (300, N_ACTIONS)
    assert jnp.allclose(outb, refb, atol=1e-1, rtol=1e-1), "bf16 kernel mismatch"

    # --- fused online+target (block-diagonal 256-wide), f32 exactness --------
    pair_f32 = prepare_pair_params(online_params, target_params, jnp.float32)
    out_on, out_tg = jax.block_until_ready(dqn_pair_forward(xb, pair_f32))
    assert jnp.allclose(out_on, refb, atol=1e-4, rtol=1e-4), "pair online mismatch"
    assert jnp.allclose(out_tg, dqn_reference(xb, target_params),
                        atol=1e-4, rtol=1e-4), "pair target mismatch"

    # --- fused pair in bf16 ----------------------------------------------------
    pair_bf16 = prepare_pair_params(online_params, target_params)
    out_on16, out_tg16 = jax.block_until_ready(dqn_pair_forward(xb, pair_bf16))
    assert jnp.allclose(out_on16, refb, atol=1e-1, rtol=1e-1), "bf16 pair mismatch"

    # --- acting path: tiny batch routes to plain XLA (no Pallas prologue) ----
    x2 = x8[:2]
    out2 = jax.block_until_ready(dqn_forward(x2, online_f32))
    assert jnp.allclose(out2, dqn_reference(x2, online_params),
                        atol=1e-5, rtol=1e-5), "small-batch fallback mismatch"

    print("KERNEL_OK")
</pallas_src>

<mosaic_0001>
module attributes {stable_mosaic.version = 11 : i64} {
  func.func @dqn_mlp_kernel(%arg0: i32, %arg1: memref<8x8xf32, #tpu.memory_space<vmem>>, %arg2: memref<8x128xf32, #tpu.memory_space<vmem>>, %arg3: memref<2x128x128xf32, #tpu.memory_space<vmem>>, %arg4: memref<8x128xf32, #tpu.memory_space<vmem>>, %arg5: memref<8x128xf32, #tpu.memory_space<vmem>>) attributes {dimension_semantics = [#tpu.dimension_semantics<parallel>], iteration_bounds = array<i64: 2>, scalar_prefetch = 0 : i64, scratch_operands = 0 : i64, tpu.core_type = #tpu.core_type<tc>, window_params = [{transform_indices = @transform_0, window_bounds = array<i64: 8, 8>}, {pipeline_mode = #tpu.pipeline_mode<synchronous>, transform_indices = @transform_1, window_bounds = array<i64: 8, 128>}, {pipeline_mode = #tpu.pipeline_mode<synchronous>, transform_indices = @transform_2, window_bounds = array<i64: 2, 128, 128>}, {pipeline_mode = #tpu.pipeline_mode<synchronous>, transform_indices = @transform_3, window_bounds = array<i64: 8, 128>}, {transform_indices = @transform_4, window_bounds = array<i64: 8, 128>}]} {
    %c0 = arith.constant 0 : index
    %c0_0 = arith.constant 0 : index
    %0 = vector.load %arg1[%c0, %c0_0] : memref<8x8xf32, #tpu.memory_space<vmem>>, vector<8x8xf32>
    %c0_1 = arith.constant 0 : index
    %c0_2 = arith.constant 0 : index
    %1 = vector.load %arg4[%c0_1, %c0_2] : memref<8x128xf32, #tpu.memory_space<vmem>>, vector<8x128xf32>
    %c0_3 = arith.constant 0 : index
    %c0_4 = arith.constant 0 : index
    %2 = vector.load %arg2[%c0_3, %c0_4] : memref<8x128xf32, #tpu.memory_space<vmem>>, vector<8x128xf32>
    %cst = arith.constant dense<0.000000e+00> : vector<8x128xf32>
    %3 = tpu.matmul %0, %2, %cst {dimension_numbers = #tpu.dot_dimension_numbers<[1], [0], [0], [1], [0, 0, 1, 1], [], []>} : vector<8x8xf32>, vector<8x128xf32>, vector<8x128xf32> -> vector<8x128xf32>
    %4 = vector.extract_strided_slice %1 {offsets = [0, 0], sizes = [1, 128], strides = [1, 1]} : vector<8x128xf32> to vector<1x128xf32>
    %5 = vector.broadcast %4 : vector<1x128xf32> to vector<8x128xf32>
    %6 = arith.addf %3, %5 : vector<8x128xf32>
    %cst_5 = arith.constant 0.000000e+00 : f32
    %7 = vector.broadcast %cst_5 : f32 to vector<8x128xf32>
    %8 = arith.maximumf %6, %7 : vector<8x128xf32>
    %c0_6 = arith.constant 0 : index
    %c0_7 = arith.constant 0 : index
    %c0_8 = arith.constant 0 : index
    %9 = vector.load %arg3[%c0_6, %c0_7, %c0_8] : memref<2x128x128xf32, #tpu.memory_space<vmem>>, vector<1x128x128xf32>
    %10 = vector.shape_cast %9 : vector<1x128x128xf32> to vector<128x128xf32>
    %cst_9 = arith.constant dense<0.000000e+00> : vector<8x128xf32>
    %11 = tpu.matmul %8, %10, %cst_9 {dimension_numbers = #tpu.dot_dimension_numbers<[1], [0], [0], [1], [0, 0, 1, 1], [], []>} : vector<8x128xf32>, vector<128x128xf32>, vector<8x128xf32> -> vector<8x128xf32>
    %12 = vector.extract_strided_slice %1 {offsets = [1, 0], sizes = [1, 128], strides = [1, 1]} : vector<8x128xf32> to vector<1x128xf32>
    %13 = vector.broadcast %12 : vector<1x128xf32> to vector<8x128xf32>
    %14 = arith.addf %11, %13 : vector<8x128xf32>
    %cst_10 = arith.constant 0.000000e+00 : f32
    %15 = vector.broadcast %cst_10 : f32 to vector<8x128xf32>
    %16 = arith.maximumf %14, %15 : vector<8x128xf32>
    %c1 = arith.constant 1 : index
    %c0_11 = arith.constant 0 : index
    %c0_12 = arith.constant 0 : index
    %17 = vector.load %arg3[%c1, %c0_11, %c0_12] : memref<2x128x128xf32, #tpu.memory_space<vmem>>, vector<1x128x128xf32>
    %18 = vector.shape_cast %17 : vector<1x128x128xf32> to vector<128x128xf32>
    %cst_13 = arith.constant dense<0.000000e+00> : vector<8x128xf32>
    %19 = tpu.matmul %16, %18, %cst_13 {dimension_numbers = #tpu.dot_dimension_numbers<[1], [0], [0], [1], [0, 0, 1, 1], [], []>} : vector<8x128xf32>, vector<128x128xf32>, vector<8x128xf32> -> vector<8x128xf32>
    %20 = vector.extract_strided_slice %1 {offsets = [2, 0], sizes = [1, 128], strides = [1, 1]} : vector<8x128xf32> to vector<1x128xf32>
    %21 = vector.broadcast %20 : vector<1x128xf32> to vector<8x128xf32>
    %22 = arith.addf %19, %21 : vector<8x128xf32>
    %c0_14 = arith.constant 0 : index
    %c0_15 = arith.constant 0 : index
    %23 = vector.load %arg5[%c0_14, %c0_15] : memref<8x128xf32, #tpu.memory_space<vmem>>, vector<8x128xf32>
    tpu.vector_store %arg5[%c0_14, %c0_15], %22 {strides = array<i32>} : memref<8x128xf32, #tpu.memory_space<vmem>>, vector<8x128xf32>,
    return
  }
  func.func @transform_0(%arg0: i32) -> (i32, i32) {
    %c0_i32 = arith.constant 0 : i32
    %c0_i32_0 = arith.constant 0 : i32
    return %arg0, %c0_i32 : i32, i32
  }
  func.func @transform_1(%arg0: i32) -> (i32, i32) {
    %c0_i32 = arith.constant 0 : i32
    %c0_i32_0 = arith.constant 0 : i32
    %c0_i32_1 = arith.constant 0 : i32
    return %c0_i32, %c0_i32_0 : i32, i32
  }
  func.func @transform_2(%arg0: i32) -> (i32, i32, i32) {
    %c0_i32 = arith.constant 0 : i32
    %c0_i32_0 = arith.constant 0 : i32
    %c0_i32_1 = arith.constant 0 : i32
    %c0_i32_2 = arith.constant 0 : i32
    return %c0_i32, %c0_i32_0, %c0_i32_1 : i32, i32, i32
  }
  func.func @transform_3(%arg0: i32) -> (i32, i32) {
    %c0_i32 = arith.constant 0 : i32
    %c0_i32_0 = arith.constant 0 : i32
    %c0_i32_1 = arith.constant 0 : i32
    return %c0_i32, %c0_i32_0 : i32, i32
  }
  func.func @transform_4(%arg0: i32) -> (i32, i32) {
    %c0_i32 = arith.constant 0 : i32
    %c0_i32_0 = arith.constant 0 : i32
    return %arg0, %c0_i32 : i32, i32
  }
}

</mosaic_0001>

<llo_original>
// kernel: tpu_custom_call.1
$region0: #{tpu_custom_call.1}
  #allocation0 [shape = 'u32[]', space=smem, size = 0x4, offset = 0x4, fixed_abs, tag = 'smem constant byte address 0x4 - core index']
  #allocation1 [shape = 'u32[144,128]{1,0:T(1,128)}', space=vmem, size = 0x12000, scoped, tag = 'internal scratch']
  %s0 = inlined_call_operand.vmem [shape: f32[16,8], index: 0, kind: input, shape index: {}]
  %s1 = inlined_call_operand.vmem [shape: f32[8,128], index: 1, kind: input, shape index: {}]
  %s2 = inlined_call_operand.hbm [shape: f32[2,128,128], index: 2, kind: input, shape index: {}]
  %s3 = inlined_call_operand.vmem [shape: f32[8,128], index: 3, kind: input, shape index: {}]
  %s4 = inlined_call_operand.hbm [shape: f32[16,128], index: 4, kind: output, shape index: {}]
  %s5 = sld [smem:[#allocation0]]
  $region53: #{tpu_custom_call.1} parent=0
    _
  %s7 = ssub.s32 1, %s5
  %s8 = scalar_select 0, %s7, %s5
  $region1: #{tpu_custom_call.1} parent=0
    #allocation2 [shape = 'u8[131072]{0}', space=vmem, size = 0x20000, scoped, tag = 'input window, operand 2, single buffered']
    #allocation3 [shape = 's32[2]{0}', space=sflag, size = 0x8, scoped, tag = 'scoped memory for tpu_custom_call.1']
    #allocation4 [shape = 's32[2]{0}', space=sflag, size = 0x8, scoped, tag = 'scoped memory for tpu_custom_call.1']
    #allocation5 [shape = 'u8[8192]{0}', space=vmem, size = 0x2000, scoped, tag = 'output window, operand 0']
    %9 = vsyncpa [#allocation3], 0
    %10 = vsyncpa [#allocation4], 0
    %s11 = scalar_lea.sflag [#allocation4], 1
    %12 = vsyncpa %s11, 0
    loop: start=0, step=1, limit=4
    $region2: #{tpu_custom_call.1} parent=1 // loop_pre_header
      _
    $region3: #{tpu_custom_call.1} parent=1 // loop_header
      %s14 = sphi 0, %s18
      %p15 = scmp.ge.s32.totalorder %s14, 4
      %s24 = sphi 0, %s26
      %s27 = sphi 0, %s24
      %s28 = sphi 0, %s27
      %s44 = sphi 0, %s28
      %s48 = sphi 0, %s48
      %s50 = sphi 0, %s48
      %s51 = sphi 0, %s50
      %s65 = sphi 0, %s51
      %s69 = sphi 0, %s69
      %s71 = sphi 0, %s69
      %s72 = sphi 0, %s71
      %s86 = sphi 0, %s72
      %s90 = sphi 0, %s90
      %s92 = sphi 0, %s90
      %s93 = sphi 0, %s92
      %s107 = sphi 0, %s93
      %s113 = sphi 0, %s115
      %s116 = sphi 0, %s113
      %s117 = sphi 0, %s116
      %s133 = sphi 0, %s117
    $region4: #{tpu_custom_call.1} parent=1 // loop_header_branch
      %17 = sbr.rel (%p15) target = $region8
    $region5: #{tpu_custom_call.1} parent=1 // loop_body
      %s19 = ssub.s32 %s14, 1
      %s20 = ssub.s32 %s14, 2
      %s21 = sadd.s32 %s14, 1
      %s22 = ssub.s32 %s14, %s21
      %p23 = scmp.eq.s32.totalorder %s22, 0
      %s25 = sadd.s32 %s24, 1
      %s26 = scalar_select %p23, %s24, %s25
      %p29 = pneg %p23
      %p30 = scmp.eq.s32.totalorder %s14, 1
      %p31 = por %p29, %p30
      %p32 = scmp.ne.s32.totalorder %s24, %s27
      %p33 = scmp.eq.s32.totalorder %s14, 0
      %p34 = por %p32, %p33
      %p35 = scmp.ne.s32.totalorder %s24, %s27
      %p36 = scmp.eq.s32.totalorder %s19, 1
      %p37 = por %p35, %p36
      %p38 = scmp.ne.s32.totalorder %s27, %s28
      %p39 = scmp.eq.s32.totalorder %s19, 0
      %p40 = por %p38, %p39
      %p41 = scmp.ne.s32.totalorder %s27, %s28
      %p42 = scmp.eq.s32.totalorder %s20, 1
      %p43 = por %p41, %p42
      %p45 = scmp.ne.s32.totalorder %s28, %s44
      %p46 = scmp.eq.s32.totalorder %s20, 0
      %p47 = por %p45, %p46
      %s49 = sadd.s32 %s48, 1
      %p52 = scmp.eq.s32.totalorder %s14, 1
      %p53 = scmp.ne.s32.totalorder %s48, %s50
      %p54 = scmp.eq.s32.totalorder %s14, 0
      %p55 = por %p53, %p54
      %p56 = scmp.ne.s32.totalorder %s48, %s50
      %p57 = scmp.eq.s32.totalorder %s19, 1
      %p58 = por %p56, %p57
      %p59 = scmp.ne.s32.totalorder %s50, %s51
      %p60 = scmp.eq.s32.totalorder %s19, 0
      %p61 = por %p59, %p60
      %p62 = scmp.ne.s32.totalorder %s50, %s51
      %p63 = scmp.eq.s32.totalorder %s20, 1
      %p64 = por %p62, %p63
      %p66 = scmp.ne.s32.totalorder %s51, %s65
      %p67 = scmp.eq.s32.totalorder %s20, 0
      %p68 = por %p66, %p67
      %s70 = sadd.s32 %s69, 1
      %p73 = scmp.eq.s32.totalorder %s14, 1
      %p74 = scmp.ne.s32.totalorder %s69, %s71
      %p75 = scmp.eq.s32.totalorder %s14, 0
      %p76 = por %p74, %p75
      %p77 = scmp.ne.s32.totalorder %s69, %s71
      %p78 = scmp.eq.s32.totalorder %s19, 1
      %p79 = por %p77, %p78
      %p80 = scmp.ne.s32.totalorder %s71, %s72
      %p81 = scmp.eq.s32.totalorder %s19, 0
      %p82 = por %p80, %p81
      %p83 = scmp.ne.s32.totalorder %s71, %s72
      %p84 = scmp.eq.s32.totalorder %s20, 1
      %p85 = por %p83, %p84
      %p87 = scmp.ne.s32.totalorder %s72, %s86
      %p88 = scmp.eq.s32.totalorder %s20, 0
      %p89 = por %p87, %p88
      %s91 = sadd.s32 %s90, 1
      %p94 = scmp.eq.s32.totalorder %s14, 1
      %p95 = scmp.ne.s32.totalorder %s90, %s92
      %p96 = scmp.eq.s32.totalorder %s14, 0
      %p97 = por %p95, %p96
      %p98 = scmp.ne.s32.totalorder %s90, %s92
      %p99 = scmp.eq.s32.totalorder %s19, 1
      %p100 = por %p98, %p99
      %p101 = scmp.ne.s32.totalorder %s92, %s93
      %p102 = scmp.eq.s32.totalorder %s19, 0
      %p103 = por %p101, %p102
      %p104 = scmp.ne.s32.totalorder %s92, %s93
      %p105 = scmp.eq.s32.totalorder %s20, 1
      %p106 = por %p104, %p105
      %p108 = scmp.ne.s32.totalorder %s93, %s107
      %p109 = scmp.eq.s32.totalorder %s20, 0
      %p110 = por %p108, %p109
      %s111 = ssub.s32 %s14, %s21
      %p112 = scmp.eq.s32.totalorder %s111, 0
      %s114 = sadd.s32 %s113, 1
      %s115 = scalar_select %p112, %s113, %s114
      %p118 = pneg %p112
      %p119 = scmp.eq.s32.totalorder %s14, 1
      %p120 = por %p118, %p119
      %p121 = scmp.ne.s32.totalorder %s113, %s116
      %p122 = scmp.eq.s32.totalorder %s14, 0
      %p123 = por %p121, %p122
      %p124 = scmp.ne.s32.totalorder %s113, %s116
      %p125 = scmp.eq.s32.totalorder %s19, 1
      %p126 = por %p124, %p125
      %p127 = scmp.ne.s32.totalorder %s116, %s117
      %p128 = scmp.eq.s32.totalorder %s19, 0
      %p129 = por %p127, %p128
      %p130 = scmp.ne.s32.totalorder %s116, %s117
      %p131 = scmp.eq.s32.totalorder %s20, 1
      %p132 = por %p130, %p131
      %p134 = scmp.ne.s32.totalorder %s117, %s133
      %p135 = scmp.eq.s32.totalorder %s20, 0
      %p136 = por %p134, %p135
      %p137 = scmp.le.s32.totalorder 1, %s14
      %p138 = scmp.lt.s32.totalorder %s14, 3
      %p139 = pnand %p137, %p138
      %p140 = pneg %p139
      // Predicated region
      $region9: #{tpu_custom_call.1} parent=5 // pred_check
        _
      $region10: #{tpu_custom_call.1} parent=5 // pred_check_branch
        %142 = sbr.rel (%p139) target = $region12
      $region11: #{tpu_custom_call.1} parent=5 // pred_region
        %s143 = ssub.s32 %s14, 1
        // Predicated region
        $region13: #{tpu_custom_call.1} parent=11 // pred_check
          %p144 = pneg %p61
        $region14: #{tpu_custom_call.1} parent=11 // pred_check_branch
          %146 = sbr.rel (%p144) target = $region16
        $region15: #{tpu_custom_call.1} parent=11 // pred_region
          _
        $region16: #{tpu_custom_call.1} parent=11 // pred_fallthru
          _
        // Predicated region
        $region17: #{tpu_custom_call.1} parent=11 // pred_check
          %p147 = pneg %p82
        $region18: #{tpu_custom_call.1} parent=11 // pred_check_branch
          %149 = sbr.rel (%p147) target = $region20
        $region19: #{tpu_custom_call.1} parent=11 // pred_region
          %s151 = ssub.s32 4096, 4096
          %152 = vsyncadd [#allocation3], %s151
          %s153 = sshll.u32 [#allocation2], 4
          %s154 = int_to_ptr.vmem [resolvable:$true] %s153
          %159 = dma.hbm_to_vmem [thread:$0]  %s2, 4096, %s154, [#allocation3], 128, 128, 8
        $region20: #{tpu_custom_call.1} parent=11 // pred_fallthru
          _
        // Predicated region
        $region21: #{tpu_custom_call.1} parent=11 // pred_check
          %p160 = pneg %p103
        $region22: #{tpu_custom_call.1} parent=11 // pred_check_branch
          %162 = sbr.rel (%p160) target = $region24
        $region23: #{tpu_custom_call.1} parent=11 // pred_region
          _
        $region24: #{tpu_custom_call.1} parent=11 // pred_fallthru
          _
      $region12: #{tpu_custom_call.1} parent=5 // pred_fallthru
        _
      %p163 = scmp.lt.s32.totalorder %s14, 2
      // Predicated region
      $region25: #{tpu_custom_call.1} parent=5 // pred_check
        %p164 = pneg %p163
      $region26: #{tpu_custom_call.1} parent=5 // pred_check_branch
        %166 = sbr.rel (%p164) target = $region28
      $region27: #{tpu_custom_call.1} parent=5 // pred_region
        // Predicated region
        $region29: #{tpu_custom_call.1} parent=27 // pred_check
          %p167 = pneg %p34
        $region30: #{tpu_custom_call.1} parent=27 // pred_check_branch
          %169 = sbr.rel (%p167) target = $region32
        $region31: #{tpu_custom_call.1} parent=27 // pred_region
          %p170 = scmp.lt.s32.totalorder %s14, 1
          %s171 = scalar_select %p170, %s14, 1
          %s172 = smul.addr %s171, 8
          %s173 = scalar_lea.vmem %s0, %s172
        $region32: #{tpu_custom_call.1} parent=27 // pred_fallthru
          _
      $region28: #{tpu_custom_call.1} parent=5 // pred_fallthru
        _
      %p174 = scmp.le.s32.totalorder 1, %s14
      %p175 = scmp.lt.s32.totalorder %s14, 3
      %p176 = pnand %p174, %p175
      %p177 = pneg %p176
      // Predicated region
      $region33: #{tpu_custom_call.1} parent=5 // pred_check
        _
      $region34: #{tpu_custom_call.1} parent=5 // pred_check_branch
        %179 = sbr.rel (%p176) target = $region36
      $region35: #{tpu_custom_call.1} parent=5 // pred_region
        %s180 = ssub.s32 %s14, 1
        // Predicated region
        $region37: #{tpu_custom_call.1} parent=35 // pred_check
          %p181 = pneg %p82
        $region38: #{tpu_custom_call.1} parent=35 // pred_check_branch
          %183 = sbr.rel (%p181) target = $region40
        $region39: #{tpu_custom_call.1} parent=35 // pred_region
          %184 = dma.done [#allocation3], 4096
        $region40: #{tpu_custom_call.1} parent=35 // pred_fallthru
          _
        %p185 = scmp.lt.s32.totalorder %s19, 1
        %s186 = scalar_select %p185, %s19, 1
        %s187 = smul.addr %s186, 8
        %s188 = scalar_lea.vmem %s0, %s187
        %p189 = pneg %p40
        %p190 = pneg %p37
        %p191 = pneg %p61
        %p192 = pneg %p58
        %p193 = pneg %p82
        %p194 = pneg %p79
        %p195 = pneg %p103
        %p196 = pneg %p100
        %p197 = pneg %p129
        %p198 = pneg %p126
        %s199 = sand.u32 %s116, 1
        %s200 = scalar_lea.sflag [#allocation4], %s199
        %s201 = sand.u32 %s116, 1
        %s202 = smul.addr %s201, 8
        %s203 = scalar_lea.vmem [#allocation5], %s202
        %p204 = scmp.lt.s32.totalorder %s19, 1
        %s205 = scalar_select %p204, %s19, 1
        %s206 = smul.addr %s205, 8
        %s207 = scalar_lea.vmem %s0, %s206
        %v208 = vld [vmem:[%s207] sm:$0xff]
        %v209 = vld [vmem:[%s3] sm:$0xff]
        %v210 = vld [vmem:[%s1] sm:$0xff]
        %v211 = vlaneseq
        %v212 = vshrl.u32 %v211, 7
        %v213 = vsub.s32 0, %v212
        %v214 = vrot.slane %v209, %v213
        %vm215 = vcmask 64512
        %v217 = vsel %vm215, %v208, 0
        %219 = vmatprep.subr.mxu0 0.0
        %220 = vmatpush1.msra.mxu0 0.0
        %221 = vmatprep.subr.mxu0 0.0
        %222 = vmatpush1.msra.mxu0 0.0
        %223 = vmatprep.subr.mxu0 0.0
        %224 = vmatpush1.msra.mxu0 0.0
        %225 = vmatprep.subr.mxu0 0.0
        %226 = vmatpush1.msra.mxu0 0.0
        %227 = vmatprep.subr.mxu0 0.0
        %228 = vmatpush1.msra.mxu0 0.0
        %229 = vmatprep.subr.mxu0 0.0
        %230 = vmatpush1.msra.mxu0 0.0
        %231 = vmatprep.subr.mxu0 0.0
        %232 = vmatpush1.msra.mxu0 0.0
        %233 = vmatprep.subr.mxu0 0.0
        %234 = vmatpush1.msra.mxu0 0.0
        %235 = vmatprep.subr.mxu0 0.0
        %236 = vmatpush1.msra.mxu0 0.0
        %237 = vmatprep.subr.mxu0 0.0
        %238 = vmatpush1.msra.mxu0 0.0
        %239 = vmatprep.subr.mxu0 0.0
        %240 = vmatpush1.msra.mxu0 0.0
        %241 = vmatprep.subr.mxu0 0.0
        %242 = vmatpush1.msra.mxu0 0.0
        %243 = vmatprep.subr.mxu0 0.0
        %244 = vmatpush1.msra.mxu0 0.0
        %245 = vmatprep.subr.mxu0 0.0
        %246 = vmatpush1.msra.mxu0 0.0
        %247 = vmatprep.subr.mxu0 0.0
        %248 = vmatpush1.msra.mxu0 0.0
        %249 = vmatprep.subr.mxu0 0.0
        %250 = vmatpush1.msra.mxu0 %v210
        %251 = vmatprep.subr.mxu0 0.0
        %252 = vmatpush2.msra.mxu0 0.0
        %253 = vmatprep.subr.mxu0 0.0
        %254 = vmatpush2.msra.mxu0 0.0
        %255 = vmatprep.subr.mxu0 0.0
        %256 = vmatpush2.msra.mxu0 0.0
        %257 = vmatprep.subr.mxu0 0.0
        %258 = vmatpush2.msra.mxu0 0.0
        %259 = vmatprep.subr.mxu0 0.0
        %260 = vmatpush2.msra.mxu0 0.0
        %261 = vmatprep.subr.mxu0 0.0
        %262 = vmatpush2.msra.mxu0 0.0
        %263 = vmatprep.subr.mxu0 0.0
        %264 = vmatpush2.msra.mxu0 0.0
        %265 = vmatprep.subr.mxu0 0.0
        %266 = vmatpush2.msra.mxu0 0.0
        %267 = vmatprep.subr.mxu0 0.0
        %268 = vmatpush2.msra.mxu0 0.0
        %269 = vmatprep.subr.mxu0 0.0
        %270 = vmatpush2.msra.mxu0 0.0
        %271 = vmatprep.subr.mxu0 0.0
        %272 = vmatpush2.msra.mxu0 0.0
        %273 = vmatprep.subr.mxu0 0.0
        %274 = vmatpush2.msra.mxu0 0.0
        %275 = vmatprep.subr.mxu0 0.0
        %276 = vmatpush2.msra.mxu0 0.0
        %277 = vmatprep.subr.mxu0 0.0
        %278 = vmatpush2.msra.mxu0 0.0
        %279 = vmatprep.subr.mxu0 0.0
        %280 = vmatpush2.msra.mxu0 0.0
        %281 = vmatprep.subr.mxu0 0.0
        %282 = vmatpush2.msra.mxu0 0.0
        %283 = vmatprep.mubr.f32.mxu0 0.0
        %284 = vmatmul.mubr.f32.gmra.mxu0 %v217
        %v285 = vpop.f32.mrf.mxu0
        %v286 = vadd.f32 %v214, %v285
        %v287 = vpop.f32.mrf.mxu0
        %288 = vdwg.mxu0
        %v289 = vmax.f32 %v286, 0.0
        %v290 = vld [vmem:[#allocation2] sm:$0xff]
        %v291 = vld [vmem:[#allocation2 + $0x8] sm:$0xff]
        %v292 = vld [vmem:[#allocation2 + $0x10] sm:$0xff]
        %v293 = vld [vmem:[#allocation2 + $0x18] sm:$0xff]
        %v294 = vld [vmem:[#allocation2 + $0x20] sm:$0xff]
        %v295 = vld [vmem:[#allocation2 + $0x28] sm:$0xff]
        %v296 = vld [vmem:[#allocation2 + $0x30] sm:$0xff]
        %v297 = vld [vmem:[#allocation2 + $0x38] sm:$0xff]
        %v298 = vld [vmem:[#allocation2 + $0x40] sm:$0xff]
        %v299 = vld [vmem:[#allocation2 + $0x48] sm:$0xff]
        %v300 = vld [vmem:[#allocation2 + $0x50] sm:$0xff]
        %v301 = vld [vmem:[#allocation2 + $0x58] sm:$0xff]
        %v302 = vld [vmem:[#allocation2 + $0x60] sm:$0xff]
        %v303 = vld [vmem:[#allocation2 + $0x68] sm:$0xff]
        %v304 = vld [vmem:[#allocation2 + $0x70] sm:$0xff]
        %v305 = vld [vmem:[#allocation2 + $0x78] sm:$0xff]
        %v306 = vlaneseq
        %v307 = vshrl.u32 %v306, 7
        %v308 = vsub.s32 1, %v307
        %v309 = vrot.slane %v209, %v308
        %310 = vmatprep.subr.mxu0 0.0
        %311 = vmatpush1.msra.mxu0 %v305
        %312 = vmatprep.subr.mxu0 0.0
        %313 = vmatpush1.msra.mxu0 %v304
        %314 = vmatprep.subr.mxu0 0.0
        %315 = vmatpush1.msra.mxu0 %v303
        %316 = vmatprep.subr.mxu0 0.0
        %317 = vmatpush1.msra.mxu0 %v302
        %318 = vmatprep.subr.mxu0 0.0
        %319 = vmatpush1.msra.mxu0 %v301
        %320 = vmatprep.subr.mxu0 0.0
        %321 = vmatpush1.msra.mxu0 %v300
        %322 = vmatprep.subr.mxu0 0.0
        %323 = vmatpush1.msra.mxu0 %v299
        %324 = vmatprep.subr.mxu0 0.0
        %325 = vmatpush1.msra.mxu0 %v298
        %326 = vmatprep.subr.mxu0 0.0
        %327 = vmatpush1.msra.mxu0 %v297
        %328 = vmatprep.subr.mxu0 0.0
        %329 = vmatpush1.msra.mxu0 %v296
        %330 = vmatprep.subr.mxu0 0.0
        %331 = vmatpush1.msra.mxu0 %v295
        %332 = vmatprep.subr.mxu0 0.0
        %333 = vmatpush1.msra.mxu0 %v294
        %334 = vmatprep.subr.mxu0 0.0
        %335 = vmatpush1.msra.mxu0 %v293
        %336 = vmatprep.subr.mxu0 0.0
        %337 = vmatpush1.msra.mxu0 %v292
        %338 = vmatprep.subr.mxu0 0.0
        %339 = vmatpush1.msra.mxu0 %v291
        %340 = vmatprep.subr.mxu0 0.0
        %341 = vmatpush1.msra.mxu0 %v290
        %342 = vmatprep.subr.mxu0 0.0
        %343 = vmatpush2.msra.mxu0 0.0
        %344 = vmatprep.subr.mxu0 0.0
        %345 = vmatpush2.msra.mxu0 0.0
        %346 = vmatprep.subr.mxu0 0.0
        %347 = vmatpush2.msra.mxu0 0.0
        %348 = vmatprep.subr.mxu0 0.0
        %349 = vmatpush2.msra.mxu0 0.0
        %350 = vmatprep.subr.mxu0 0.0
        %351 = vmatpush2.msra.mxu0 0.0
        %352 = vmatprep.subr.mxu0 0.0
        %353 = vmatpush2.msra.mxu0 0.0
        %354 = vmatprep.subr.mxu0 0.0
        %355 = vmatpush2.msra.mxu0 0.0
        %356 = vmatprep.subr.mxu0 0.0
        %357 = vmatpush2.msra.mxu0 0.0
        %358 = vmatprep.subr.mxu0 0.0
        %359 = vmatpush2.msra.mxu0 0.0
        %360 = vmatprep.subr.mxu0 0.0
        %361 = vmatpush2.msra.mxu0 0.0
        %362 = vmatprep.subr.mxu0 0.0
        %363 = vmatpush2.msra.mxu0 0.0
        %364 = vmatprep.subr.mxu0 0.0
        %365 = vmatpush2.msra.mxu0 0.0
        %366 = vmatprep.subr.mxu0 0.0
        %367 = vmatpush2.msra.mxu0 0.0
        %368 = vmatprep.subr.mxu0 0.0
        %369 = vmatpush2.msra.mxu0 0.0
        %370 = vmatprep.subr.mxu0 0.0
        %371 = vmatpush2.msra.mxu0 0.0
        %372 = vmatprep.subr.mxu0 0.0
        %373 = vmatpush2.msra.mxu0 0.0
        %374 = vmatprep.mubr.f32.mxu0 0.0
        %375 = vmatmul.mubr.f32.gmra.mxu0 %v289
        %v376 = vpop.f32.mrf.mxu0
        %v377 = vadd.f32 %v309, %v376
        %v378 = vpop.f32.mrf.mxu0
        %379 = vdwg.mxu0
        %v380 = vmax.f32 %v377, 0.0
        %s381 = scalar_lea.vmem [#allocation2], 128
        %v382 = vld [vmem:[%s381] sm:$0xff]
        %v383 = vld [vmem:[%s381 + $0x8] sm:$0xff]
        %v384 = vld [vmem:[%s381 + $0x10] sm:$0xff]
        %v385 = vld [vmem:[%s381 + $0x18] sm:$0xff]
        %v386 = vld [vmem:[%s381 + $0x20] sm:$0xff]
        %v387 = vld [vmem:[%s381 + $0x28] sm:$0xff]
        %v388 = vld [vmem:[%s381 + $0x30] sm:$0xff]
        %v389 = vld [vmem:[%s381 + $0x38] sm:$0xff]
        %v390 = vld [vmem:[%s381 + $0x40] sm:$0xff]
        %v391 = vld [vmem:[%s381 + $0x48] sm:$0xff]
        %v392 = vld [vmem:[%s381 + $0x50] sm:$0xff]
        %v393 = vld [vmem:[%s381 + $0x58] sm:$0xff]
        %v394 = vld [vmem:[%s381 + $0x60] sm:$0xff]
        %v395 = vld [vmem:[%s381 + $0x68] sm:$0xff]
        %v396 = vld [vmem:[%s381 + $0x70] sm:$0xff]
        %v397 = vld [vmem:[%s381 + $0x78] sm:$0xff]
        %v398 = vlaneseq
        %v399 = vshrl.u32 %v398, 7
        %v400 = vsub.s32 2, %v399
        %v401 = vrot.slane %v209, %v400
        %402 = vmatprep.subr.mxu0 0.0
        %403 = vmatpush1.msra.mxu0 %v397
        %404 = vmatprep.subr.mxu0 0.0
        %405 = vmatpush1.msra.mxu0 %v396
        %406 = vmatprep.subr.mxu0 0.0
        %407 = vmatpush1.msra.mxu0 %v395
        %408 = vmatprep.subr.mxu0 0.0
        %409 = vmatpush1.msra.mxu0 %v394
        %410 = vmatprep.subr.mxu0 0.0
        %411 = vmatpush1.msra.mxu0 %v393
        %412 = vmatprep.subr.mxu0 0.0
        %413 = vmatpush1.msra.mxu0 %v392
        %414 = vmatprep.subr.mxu0 0.0
        %415 = vmatpush1.msra.mxu0 %v391
        %416 = vmatprep.subr.mxu0 0.0
        %417 = vmatpush1.msra.mxu0 %v390
        %418 = vmatprep.subr.mxu0 0.0
        %419 = vmatpush1.msra.mxu0 %v389
        %420 = vmatprep.subr.mxu0 0.0
        %421 = vmatpush1.msra.mxu0 %v388
        %422 = vmatprep.subr.mxu0 0.0
        %423 = vmatpush1.msra.mxu0 %v387
        %424 = vmatprep.subr.mxu0 0.0
        %425 = vmatpush1.msra.mxu0 %v386
        %426 = vmatprep.subr.mxu0 0.0
        %427 = vmatpush1.msra.mxu0 %v385
        %428 = vmatprep.subr.mxu0 0.0
        %429 = vmatpush1.msra.mxu0 %v384
        %430 = vmatprep.subr.mxu0 0.0
        %431 = vmatpush1.msra.mxu0 %v383
        %432 = vmatprep.subr.mxu0 0.0
        %433 = vmatpush1.msra.mxu0 %v382
        %434 = vmatprep.subr.mxu0 0.0
        %435 = vmatpush2.msra.mxu0 0.0
        %436 = vmatprep.subr.mxu0 0.0
        %437 = vmatpush2.msra.mxu0 0.0
        %438 = vmatprep.subr.mxu0 0.0
        %439 = vmatpush2.msra.mxu0 0.0
        %440 = vmatprep.subr.mxu0 0.0
        %441 = vmatpush2.msra.mxu0 0.0
        %442 = vmatprep.subr.mxu0 0.0
        %443 = vmatpush2.msra.mxu0 0.0
        %444 = vmatprep.subr.mxu0 0.0
        %445 = vmatpush2.msra.mxu0 0.0
        %446 = vmatprep.subr.mxu0 0.0
        %447 = vmatpush2.msra.mxu0 0.0
        %448 = vmatprep.subr.mxu0 0.0
        %449 = vmatpush2.msra.mxu0 0.0
        %450 = vmatprep.subr.mxu0 0.0
        %451 = vmatpush2.msra.mxu0 0.0
        %452 = vmatprep.subr.mxu0 0.0
        %453 = vmatpush2.msra.mxu0 0.0
        %454 = vmatprep.subr.mxu0 0.0
        %455 = vmatpush2.msra.mxu0 0.0
        %456 = vmatprep.subr.mxu0 0.0
        %457 = vmatpush2.msra.mxu0 0.0
        %458 = vmatprep.subr.mxu0 0.0
        %459 = vmatpush2.msra.mxu0 0.0
        %460 = vmatprep.subr.mxu0 0.0
        %461 = vmatpush2.msra.mxu0 0.0
        %462 = vmatprep.subr.mxu0 0.0
        %463 = vmatpush2.msra.mxu0 0.0
        %464 = vmatprep.subr.mxu0 0.0
        %465 = vmatpush2.msra.mxu0 0.0
        %466 = vmatprep.mubr.f32.mxu0 0.0
        %467 = vmatmul.mubr.f32.gmra.mxu0 %v380
        %v468 = vpop.f32.mrf.mxu0
        %v469 = vadd.f32 %v401, %v468
        %v470 = vpop.f32.mrf.mxu0
        %471 = vdwg.mxu0
        %472 = vst [vmem:[%s203] sm:$0xff] %v469
        %s473 = sand.u32 %s116, 1
        %s474 = scalar_lea.sflag [#allocation4], %s473
        %s475 = sand.u32 %s116, 1
        %s476 = smul.addr %s475, 8
        %s477 = scalar_lea.vmem [#allocation5], %s476
        // Predicated region
        $region41: #{tpu_custom_call.1} parent=35 // pred_check
          %p478 = pneg %p126
        $region42: #{tpu_custom_call.1} parent=35 // pred_check_branch
          %480 = sbr.rel (%p478) target = $region44
        $region43: #{tpu_custom_call.1} parent=35 // pred_region
          %s482 = ssub.s32 128, 128
          %483 = vsyncadd %s474, %s482
          %s484 = smul.addr %s19, 128
          %s485 = scalar_lea.hbm %s4, %s484
          %s487 = sshll.u32 %s477, 4
          %s488 = int_to_ptr.vmem [resolvable:$true] %s487
          %490 = dma.vmem_to_hbm [thread:$0]  %s488, 128, %s485, %s474
        $region44: #{tpu_custom_call.1} parent=35 // pred_fallthru
          _
      $region36: #{tpu_custom_call.1} parent=5 // pred_fallthru
        _
      %p491 = scmp.le.s32.totalorder 2, %s14
      // Predicated region
      $region45: #{tpu_custom_call.1} parent=5 // pred_check
        %p492 = pneg %p491
      $region46: #{tpu_custom_call.1} parent=5 // pred_check_branch
        %494 = sbr.rel (%p492) target = $region48
      $region47: #{tpu_custom_call.1} parent=5 // pred_region
        %s495 = ssub.s32 %s14, 2
        // Predicated region
        $region49: #{tpu_custom_call.1} parent=47 // pred_check
          %p496 = pneg %p132
        $region50: #{tpu_custom_call.1} parent=47 // pred_check_branch
          %498 = sbr.rel (%p496) target = $region52
        $region51: #{tpu_custom_call.1} parent=47 // pred_region
          %s499 = sand.u32 %s117, 1
          %s500 = scalar_lea.sflag [#allocation4], %s499
          %s501 = sand.u32 %s117, 1
          %s502 = smul.addr %s501, 8
          %s503 = scalar_lea.vmem [#allocation5], %s502
          %504 = dma.done %s500, 128
        $region52: #{tpu_custom_call.1} parent=47 // pred_fallthru
          _
      $region48: #{tpu_custom_call.1} parent=5 // pred_fallthru
        _
    $region6: #{tpu_custom_call.1} parent=1 // loop_footer
      %s18 = sadd.s32 1, %s14
    $region7: #{tpu_custom_call.1} parent=1 // loop_footer_branch
      %13 = sbr.rel target = $region3
    $region8: #{tpu_custom_call.1} parent=1 // loop_exit
      _
    %505 = vsyncpa [#allocation3], 1
    %s506 = scalar_lea.sflag [#allocation3], 1
    %507 = vsyncpa %s506, 1
    %508 = vsyncpa [#allocation4], 1
    %s509 = scalar_lea.sflag [#allocation4], 1
    %510 = vsyncpa %s509, 1

</llo_original>
